<compile_context>
chip_gen: v6e
topology: v6e:2x2x1
jax: 0.10.0
libtpu: 0.0.40
codegen_flags: <defaults>
</compile_context>

<pallas_src>
import jax
import jax.numpy as jnp
from jax import lax
from jax.experimental import pallas as pl
from jax.experimental.pallas import tpu as pltpu

# Model hyper-params (small, consistent with the module's __init__):
STATE_SPACE = 8      # layers[0] is overwritten with state_space in Actor.__init__
HIDDEN = 32          # layers[1]
ACTION_SPACE = 4     # layers[-1]
BATCH = 2

TOLERANCE = 1e-4
TOLERANCE_SQ = TOLERANCE * TOLERANCE
MAX_ITERATIONS = 50
CHECK_PERIOD = 5                         # convergence check once per this many steps
assert MAX_ITERATIONS % CHECK_PERIOD == 0
NUM_BLOCKS = MAX_ITERATIONS // CHECK_PERIOD


def actor_kernel(xT_ref, w_in_ref, b_in_ref, w_fp_t_ref, w_h_ref, b_h_ref,
                 w_o_ref, b_o_ref, outT_ref):
    S, B = xT_ref.shape                                           # (state, batch)

    # --- Transformers.linear + tanh (MXU, once, transposed space) --------
    zT_in = jnp.tanh(
        jnp.dot(w_in_ref[...], xT_ref[...], preferred_element_type=jnp.float32)
        + b_in_ref[...])                                          # (S, B)

    # --- Hoisted circulant form of the fixed-point weight -----------------
    # w_fp_t_ref holds W_fp^T (shape (S, S)). For every shift s we pair
    # diag(roll_s(W_fp^T)) with roll_s(z) using the SAME roll primitive, which
    # makes sum_s diag(roll_s(W^T)) * roll_s(z) == W @ z independent of the
    # roll direction convention. All weight-plane work happens once, here.
    w_fp_t = w_fp_t_ref[...]                                      # (S, S)
    rows = lax.broadcasted_iota(jnp.int32, (S, S), 0)
    cols = lax.broadcasted_iota(jnp.int32, (S, S), 1)
    eye_f = (rows == cols).astype(jnp.float32)                    # (S, S)
    w_planes = []
    for s in range(S):
        w_rot = w_fp_t if s == 0 else pltpu.roll(w_fp_t, shift=s, axis=0)
        diag = jnp.sum(w_rot * eye_f, axis=1, keepdims=True)      # (S, 1)
        w_planes.append(jnp.broadcast_to(diag, (S, B)))           # hoisted (S, B)

    def fp_step(z):
        # W_fp @ z via 7 sublane rolls (XLU) + 8 muls + balanced add tree (VALU)
        # + one tanh (EUP). No MXU on the serial chain.
        terms = [w_planes[0] * z]
        for s in range(1, S):
            terms.append(w_planes[s] * pltpu.roll(z, shift=s, axis=0))
        while len(terms) > 1:
            nxt = [terms[i] + terms[i + 1] for i in range(0, len(terms) - 1, 2)]
            if len(terms) % 2:
                nxt.append(terms[-1])
            terms = nxt
        return jnp.tanh(terms[0] + zT_in)

    # --- FixedPointLayer: while_loop, convergence checked per block -------
    def fp_cond(carry):
        blk, _, err_sq = carry
        return jnp.logical_and(blk < NUM_BLOCKS, err_sq >= TOLERANCE_SQ)

    def fp_body(carry):
        blk, z, _ = carry
        for _ in range(CHECK_PERIOD - 1):                         # unchecked steps
            z = fp_step(z)
        z_prev = z
        z_new = fp_step(z_prev)
        d = z_new - z_prev
        err_sq = jnp.sum(d * d)       # squared Frobenius norm, once per block
        return blk + 1, z_new, err_sq

    z0 = jnp.zeros_like(zT_in)
    _, zT, _ = lax.while_loop(fp_cond, fp_body,
                              (jnp.int32(0), z0, jnp.float32(jnp.inf)))

    # --- hidden_0 + tanh, output linear, tanh, scale (MXU, once) ----------
    hT = jnp.tanh(
        jnp.dot(w_h_ref[...], zT, preferred_element_type=jnp.float32)
        + b_h_ref[...])                                           # (H, B)
    oT = jnp.dot(w_o_ref[...], hT, preferred_element_type=jnp.float32) \
        + b_o_ref[...]                                            # (A, B)
    outT_ref[...] = jnp.tanh(oT) * jnp.float32(outT_ref.shape[0])


@jax.jit
def actor_forward(x, w_in, b_in, w_fp, w_h, b_h, w_o, b_o):
    """x: (batch, state). Weights in PyTorch nn.Linear orientation (out, in),
    biases 1-D (out,). Returns (batch, action_space)."""
    B = x.shape[0]
    S = w_in.shape[0]
    H = w_h.shape[0]
    A = w_o.shape[0]
    vmem = pl.BlockSpec(memory_space=pltpu.MemorySpace.VMEM)
    outT = pl.pallas_call(
        actor_kernel,
        out_shape=jax.ShapeDtypeStruct((A, B), jnp.float32),
        in_specs=[vmem] * 8,
        out_specs=vmem,
    )(x.T,                                          # (S, B) lane-dense activations
      w_in,                                         # (S, S)
      jnp.broadcast_to(b_in[:, None], (S, B)),      # pre-broadcast column bias
      w_fp.T,                                       # (S, S): W_fp^T for circulant matvec
      w_h,                                          # (H, S)
      jnp.broadcast_to(b_h[:, None], (H, B)),
      w_o,                                          # (A, H)
      jnp.broadcast_to(b_o[:, None], (A, B)))
    return outT.T                                   # (B, A)


def actor_reference(x, w_in, b_in, w_fp, w_h, b_h, w_o, b_o):
    """Pure-JAX reference with the module's exact compute-then-break semantics."""
    z_in = jnp.tanh(x @ w_in.T + b_in)
    z = jnp.zeros_like(z_in)
    for _ in range(MAX_ITERATIONS):
        z_next = jnp.tanh(z @ w_fp.T + z_in)
        err = jnp.sqrt(jnp.sum((z - z_next) ** 2))
        z = z_next
        if float(err) < TOLERANCE:
            break
    h = jnp.tanh(z @ w_h.T + b_h)
    o = h @ w_o.T + b_o
    return jnp.tanh(o) * w_o.shape[0]


if __name__ == "__main__":
    key = jax.random.PRNGKey(0)
    k_x, k_win, k_bin, k_wfp, k_wh, k_bh, k_wo, k_bo = jax.random.split(key, 8)

    x = jax.random.normal(k_x, (BATCH, STATE_SPACE), jnp.float32)

    # PyTorch nn.Linear orientation: weight (out, in), bias (out,).
    w_in = jax.random.normal(k_win, (STATE_SPACE, STATE_SPACE), jnp.float32) * 0.3
    b_in = jax.random.normal(k_bin, (STATE_SPACE,), jnp.float32) * 0.1
    # Clearly contractive fixed-point weight so the loop converges well inside 50 steps.
    w_fp = jax.random.normal(k_wfp, (STATE_SPACE, STATE_SPACE), jnp.float32) * 0.08
    w_h = jax.random.normal(k_wh, (HIDDEN, STATE_SPACE), jnp.float32) * 0.3
    b_h = jax.random.normal(k_bh, (HIDDEN,), jnp.float32) * 0.1
    w_o = jax.random.normal(k_wo, (ACTION_SPACE, HIDDEN), jnp.float32) * 0.3
    b_o = jax.random.normal(k_bo, (ACTION_SPACE,), jnp.float32) * 0.1

    out = actor_forward(x, w_in, b_in, w_fp, w_h, b_h, w_o, b_o)
    out = jax.block_until_ready(out)

    ref = actor_reference(x, w_in, b_in, w_fp, w_h, b_h, w_o, b_o)
    assert out.shape == (BATCH, ACTION_SPACE)
    assert bool(jnp.all(jnp.isfinite(out)))
    # The kernel checks convergence once every CHECK_PERIOD steps, so it may run
    # up to CHECK_PERIOD-1 extra refinement iterations past the reference's exact
    # stopping step; each extra step moves z by < TOLERANCE (contraction), so the
    # outputs agree to a small multiple of the module's 1e-4 tolerance.
    assert jnp.allclose(out, ref, atol=5e-3, rtol=0.0), (out, ref)

    print("KERNEL_OK")
</pallas_src>

<mosaic_0001>
module attributes {stable_mosaic.version = 11 : i64} {
  func.func @actor_kernel(%arg0: memref<8x2xf32, #tpu.memory_space<vmem>>, %arg1: memref<8x8xf32, #tpu.memory_space<vmem>>, %arg2: memref<8x2xf32, #tpu.memory_space<vmem>>, %arg3: memref<8x8xf32, #tpu.memory_space<vmem>>, %arg4: memref<32x8xf32, #tpu.memory_space<vmem>>, %arg5: memref<32x2xf32, #tpu.memory_space<vmem>>, %arg6: memref<4x32xf32, #tpu.memory_space<vmem>>, %arg7: memref<4x2xf32, #tpu.memory_space<vmem>>, %arg8: memref<4x2xf32, #tpu.memory_space<vmem>>) attributes {dimension_semantics = [], scalar_prefetch = 0 : i64, scratch_operands = 0 : i64, tpu.core_type = #tpu.core_type<tc>} {
    %c0 = arith.constant 0 : index
    %c0_0 = arith.constant 0 : index
    %0 = vector.load %arg1[%c0, %c0_0] : memref<8x8xf32, #tpu.memory_space<vmem>>, vector<8x8xf32>
    %c0_1 = arith.constant 0 : index
    %c0_2 = arith.constant 0 : index
    %1 = vector.load %arg0[%c0_1, %c0_2] : memref<8x2xf32, #tpu.memory_space<vmem>>, vector<8x2xf32>
    %cst = arith.constant dense<0.000000e+00> : vector<8x2xf32>
    %2 = tpu.matmul %0, %1, %cst {dimension_numbers = #tpu.dot_dimension_numbers<[1], [0], [0], [1], [0, 0, 1, 1], [], []>} : vector<8x8xf32>, vector<8x2xf32>, vector<8x2xf32> -> vector<8x2xf32>
    %c0_3 = arith.constant 0 : index
    %c0_4 = arith.constant 0 : index
    %3 = vector.load %arg2[%c0_3, %c0_4] : memref<8x2xf32, #tpu.memory_space<vmem>>, vector<8x2xf32>
    %4 = arith.addf %2, %3 : vector<8x2xf32>
    %5 = math.tanh %4 : vector<8x2xf32>
    %c0_5 = arith.constant 0 : index
    %c0_6 = arith.constant 0 : index
    %6 = vector.load %arg3[%c0_5, %c0_6] : memref<8x8xf32, #tpu.memory_space<vmem>>, vector<8x8xf32>
    %7 = tpu.iota {dimensions = array<i32: 0>} : vector<8x8xi32>
    %8 = tpu.iota {dimensions = array<i32: 1>} : vector<8x8xi32>
    %9 = arith.cmpi eq, %7, %8 : vector<8x8xi32>
    %10 = arith.extui %9 : vector<8x8xi1> to vector<8x8xi32>
    %11 = arith.sitofp %10 : vector<8x8xi32> to vector<8x8xf32>
    %12 = arith.mulf %6, %11 : vector<8x8xf32>
    %cst_7 = arith.constant dense<0.000000e+00> : vector<8xf32>
    %13 = vector.multi_reduction <add>, %12, %cst_7 [1] : vector<8x8xf32> to vector<8xf32>
    %14 = vector.shape_cast %13 : vector<8xf32> to vector<8x1xf32>
    %15 = vector.shape_cast %14 : vector<8x1xf32> to vector<8x1xf32>
    %16 = vector.broadcast %15 : vector<8x1xf32> to vector<8x2xf32>
    %c1_i32 = arith.constant 1 : i32
    %17 = tpu.dynamic_rotate %6 by %c1_i32 dim 0 : vector<8x8xf32>, i32 -> vector<8x8xf32>
    %18 = arith.mulf %17, %11 : vector<8x8xf32>
    %cst_8 = arith.constant dense<0.000000e+00> : vector<8xf32>
    %19 = vector.multi_reduction <add>, %18, %cst_8 [1] : vector<8x8xf32> to vector<8xf32>
    %20 = vector.shape_cast %19 : vector<8xf32> to vector<8x1xf32>
    %21 = vector.shape_cast %20 : vector<8x1xf32> to vector<8x1xf32>
    %22 = vector.broadcast %21 : vector<8x1xf32> to vector<8x2xf32>
    %c2_i32 = arith.constant 2 : i32
    %23 = tpu.dynamic_rotate %6 by %c2_i32 dim 0 : vector<8x8xf32>, i32 -> vector<8x8xf32>
    %24 = arith.mulf %23, %11 : vector<8x8xf32>
    %cst_9 = arith.constant dense<0.000000e+00> : vector<8xf32>
    %25 = vector.multi_reduction <add>, %24, %cst_9 [1] : vector<8x8xf32> to vector<8xf32>
    %26 = vector.shape_cast %25 : vector<8xf32> to vector<8x1xf32>
    %27 = vector.shape_cast %26 : vector<8x1xf32> to vector<8x1xf32>
    %28 = vector.broadcast %27 : vector<8x1xf32> to vector<8x2xf32>
    %c3_i32 = arith.constant 3 : i32
    %29 = tpu.dynamic_rotate %6 by %c3_i32 dim 0 : vector<8x8xf32>, i32 -> vector<8x8xf32>
    %30 = arith.mulf %29, %11 : vector<8x8xf32>
    %cst_10 = arith.constant dense<0.000000e+00> : vector<8xf32>
    %31 = vector.multi_reduction <add>, %30, %cst_10 [1] : vector<8x8xf32> to vector<8xf32>
    %32 = vector.shape_cast %31 : vector<8xf32> to vector<8x1xf32>
    %33 = vector.shape_cast %32 : vector<8x1xf32> to vector<8x1xf32>
    %34 = vector.broadcast %33 : vector<8x1xf32> to vector<8x2xf32>
    %c4_i32 = arith.constant 4 : i32
    %35 = tpu.dynamic_rotate %6 by %c4_i32 dim 0 : vector<8x8xf32>, i32 -> vector<8x8xf32>
    %36 = arith.mulf %35, %11 : vector<8x8xf32>
    %cst_11 = arith.constant dense<0.000000e+00> : vector<8xf32>
    %37 = vector.multi_reduction <add>, %36, %cst_11 [1] : vector<8x8xf32> to vector<8xf32>
    %38 = vector.shape_cast %37 : vector<8xf32> to vector<8x1xf32>
    %39 = vector.shape_cast %38 : vector<8x1xf32> to vector<8x1xf32>
    %40 = vector.broadcast %39 : vector<8x1xf32> to vector<8x2xf32>
    %c5_i32 = arith.constant 5 : i32
    %41 = tpu.dynamic_rotate %6 by %c5_i32 dim 0 : vector<8x8xf32>, i32 -> vector<8x8xf32>
    %42 = arith.mulf %41, %11 : vector<8x8xf32>
    %cst_12 = arith.constant dense<0.000000e+00> : vector<8xf32>
    %43 = vector.multi_reduction <add>, %42, %cst_12 [1] : vector<8x8xf32> to vector<8xf32>
    %44 = vector.shape_cast %43 : vector<8xf32> to vector<8x1xf32>
    %45 = vector.shape_cast %44 : vector<8x1xf32> to vector<8x1xf32>
    %46 = vector.broadcast %45 : vector<8x1xf32> to vector<8x2xf32>
    %c6_i32 = arith.constant 6 : i32
    %47 = tpu.dynamic_rotate %6 by %c6_i32 dim 0 : vector<8x8xf32>, i32 -> vector<8x8xf32>
    %48 = arith.mulf %47, %11 : vector<8x8xf32>
    %cst_13 = arith.constant dense<0.000000e+00> : vector<8xf32>
    %49 = vector.multi_reduction <add>, %48, %cst_13 [1] : vector<8x8xf32> to vector<8xf32>
    %50 = vector.shape_cast %49 : vector<8xf32> to vector<8x1xf32>
    %51 = vector.shape_cast %50 : vector<8x1xf32> to vector<8x1xf32>
    %52 = vector.broadcast %51 : vector<8x1xf32> to vector<8x2xf32>
    %c7_i32 = arith.constant 7 : i32
    %53 = tpu.dynamic_rotate %6 by %c7_i32 dim 0 : vector<8x8xf32>, i32 -> vector<8x8xf32>
    %54 = arith.mulf %53, %11 : vector<8x8xf32>
    %cst_14 = arith.constant dense<0.000000e+00> : vector<8xf32>
    %55 = vector.multi_reduction <add>, %54, %cst_14 [1] : vector<8x8xf32> to vector<8xf32>
    %56 = vector.shape_cast %55 : vector<8xf32> to vector<8x1xf32>
    %57 = vector.shape_cast %56 : vector<8x1xf32> to vector<8x1xf32>
    %58 = vector.broadcast %57 : vector<8x1xf32> to vector<8x2xf32>
    %cst_15 = arith.constant 0.000000e+00 : f32
    %59 = vector.broadcast %cst_15 : f32 to vector<8x2xf32>
    %c0_i32 = arith.constant 0 : i32
    %cst_16 = arith.constant 0x7F800000 : f32
    %60:3 = scf.while (%arg9 = %c0_i32, %arg10 = %59, %arg11 = %cst_16) : (i32, vector<8x2xf32>, f32) -> (i32, vector<8x2xf32>, f32) {
      %c10_i32 = arith.constant 10 : i32
      %74 = arith.cmpi slt, %arg9, %c10_i32 : i32
      %cst_30 = arith.constant 9.99999993E-9 : f32
      %75 = arith.cmpf oge, %arg11, %cst_30 : f32
      %76 = arith.andi %74, %75 : i1
      scf.condition(%76) %arg9, %arg10, %arg11 : i32, vector<8x2xf32>, f32
    } do {
    ^bb0(%arg9: i32, %arg10: vector<8x2xf32>, %arg11: f32):
      %74 = arith.mulf %16, %arg10 : vector<8x2xf32>
      %c1_i32_30 = arith.constant 1 : i32
      %75 = tpu.dynamic_rotate %arg10 by %c1_i32_30 dim 0 : vector<8x2xf32>, i32 -> vector<8x2xf32>
      %76 = arith.mulf %22, %75 : vector<8x2xf32>
      %c2_i32_31 = arith.constant 2 : i32
      %77 = tpu.dynamic_rotate %arg10 by %c2_i32_31 dim 0 : vector<8x2xf32>, i32 -> vector<8x2xf32>
      %78 = arith.mulf %28, %77 : vector<8x2xf32>
      %c3_i32_32 = arith.constant 3 : i32
      %79 = tpu.dynamic_rotate %arg10 by %c3_i32_32 dim 0 : vector<8x2xf32>, i32 -> vector<8x2xf32>
      %80 = arith.mulf %34, %79 : vector<8x2xf32>
      %c4_i32_33 = arith.constant 4 : i32
      %81 = tpu.dynamic_rotate %arg10 by %c4_i32_33 dim 0 : vector<8x2xf32>, i32 -> vector<8x2xf32>
      %82 = arith.mulf %40, %81 : vector<8x2xf32>
      %c5_i32_34 = arith.constant 5 : i32
      %83 = tpu.dynamic_rotate %arg10 by %c5_i32_34 dim 0 : vector<8x2xf32>, i32 -> vector<8x2xf32>
      %84 = arith.mulf %46, %83 : vector<8x2xf32>
      %c6_i32_35 = arith.constant 6 : i32
      %85 = tpu.dynamic_rotate %arg10 by %c6_i32_35 dim 0 : vector<8x2xf32>, i32 -> vector<8x2xf32>
      %86 = arith.mulf %52, %85 : vector<8x2xf32>
      %c7_i32_36 = arith.constant 7 : i32
      %87 = tpu.dynamic_rotate %arg10 by %c7_i32_36 dim 0 : vector<8x2xf32>, i32 -> vector<8x2xf32>
      %88 = arith.mulf %58, %87 : vector<8x2xf32>
      %89 = arith.addf %74, %76 : vector<8x2xf32>
      %90 = arith.addf %78, %80 : vector<8x2xf32>
      %91 = arith.addf %82, %84 : vector<8x2xf32>
      %92 = arith.addf %86, %88 : vector<8x2xf32>
      %93 = arith.addf %89, %90 : vector<8x2xf32>
      %94 = arith.addf %91, %92 : vector<8x2xf32>
      %95 = arith.addf %93, %94 : vector<8x2xf32>
      %96 = arith.addf %95, %5 : vector<8x2xf32>
      %97 = math.tanh %96 : vector<8x2xf32>
      %98 = arith.mulf %16, %97 : vector<8x2xf32>
      %c1_i32_37 = arith.constant 1 : i32
      %99 = tpu.dynamic_rotate %97 by %c1_i32_37 dim 0 : vector<8x2xf32>, i32 -> vector<8x2xf32>
      %100 = arith.mulf %22, %99 : vector<8x2xf32>
      %c2_i32_38 = arith.constant 2 : i32
      %101 = tpu.dynamic_rotate %97 by %c2_i32_38 dim 0 : vector<8x2xf32>, i32 -> vector<8x2xf32>
      %102 = arith.mulf %28, %101 : vector<8x2xf32>
      %c3_i32_39 = arith.constant 3 : i32
      %103 = tpu.dynamic_rotate %97 by %c3_i32_39 dim 0 : vector<8x2xf32>, i32 -> vector<8x2xf32>
      %104 = arith.mulf %34, %103 : vector<8x2xf32>
      %c4_i32_40 = arith.constant 4 : i32
      %105 = tpu.dynamic_rotate %97 by %c4_i32_40 dim 0 : vector<8x2xf32>, i32 -> vector<8x2xf32>
      %106 = arith.mulf %40, %105 : vector<8x2xf32>
      %c5_i32_41 = arith.constant 5 : i32
      %107 = tpu.dynamic_rotate %97 by %c5_i32_41 dim 0 : vector<8x2xf32>, i32 -> vector<8x2xf32>
      %108 = arith.mulf %46, %107 : vector<8x2xf32>
      %c6_i32_42 = arith.constant 6 : i32
      %109 = tpu.dynamic_rotate %97 by %c6_i32_42 dim 0 : vector<8x2xf32>, i32 -> vector<8x2xf32>
      %110 = arith.mulf %52, %109 : vector<8x2xf32>
      %c7_i32_43 = arith.constant 7 : i32
      %111 = tpu.dynamic_rotate %97 by %c7_i32_43 dim 0 : vector<8x2xf32>, i32 -> vector<8x2xf32>
      %112 = arith.mulf %58, %111 : vector<8x2xf32>
      %113 = arith.addf %98, %100 : vector<8x2xf32>
      %114 = arith.addf %102, %104 : vector<8x2xf32>
      %115 = arith.addf %106, %108 : vector<8x2xf32>
      %116 = arith.addf %110, %112 : vector<8x2xf32>
      %117 = arith.addf %113, %114 : vector<8x2xf32>
      %118 = arith.addf %115, %116 : vector<8x2xf32>
      %119 = arith.addf %117, %118 : vector<8x2xf32>
      %120 = arith.addf %119, %5 : vector<8x2xf32>
      %121 = math.tanh %120 : vector<8x2xf32>
      %122 = arith.mulf %16, %121 : vector<8x2xf32>
      %c1_i32_44 = arith.constant 1 : i32
      %123 = tpu.dynamic_rotate %121 by %c1_i32_44 dim 0 : vector<8x2xf32>, i32 -> vector<8x2xf32>
      %124 = arith.mulf %22, %123 : vector<8x2xf32>
      %c2_i32_45 = arith.constant 2 : i32
      %125 = tpu.dynamic_rotate %121 by %c2_i32_45 dim 0 : vector<8x2xf32>, i32 -> vector<8x2xf32>
      %126 = arith.mulf %28, %125 : vector<8x2xf32>
      %c3_i32_46 = arith.constant 3 : i32
      %127 = tpu.dynamic_rotate %121 by %c3_i32_46 dim 0 : vector<8x2xf32>, i32 -> vector<8x2xf32>
      %128 = arith.mulf %34, %127 : vector<8x2xf32>
      %c4_i32_47 = arith.constant 4 : i32
      %129 = tpu.dynamic_rotate %121 by %c4_i32_47 dim 0 : vector<8x2xf32>, i32 -> vector<8x2xf32>
      %130 = arith.mulf %40, %129 : vector<8x2xf32>
      %c5_i32_48 = arith.constant 5 : i32
      %131 = tpu.dynamic_rotate %121 by %c5_i32_48 dim 0 : vector<8x2xf32>, i32 -> vector<8x2xf32>
      %132 = arith.mulf %46, %131 : vector<8x2xf32>
      %c6_i32_49 = arith.constant 6 : i32
      %133 = tpu.dynamic_rotate %121 by %c6_i32_49 dim 0 : vector<8x2xf32>, i32 -> vector<8x2xf32>
      %134 = arith.mulf %52, %133 : vector<8x2xf32>
      %c7_i32_50 = arith.constant 7 : i32
      %135 = tpu.dynamic_rotate %121 by %c7_i32_50 dim 0 : vector<8x2xf32>, i32 -> vector<8x2xf32>
      %136 = arith.mulf %58, %135 : vector<8x2xf32>
      %137 = arith.addf %122, %124 : vector<8x2xf32>
      %138 = arith.addf %126, %128 : vector<8x2xf32>
      %139 = arith.addf %130, %132 : vector<8x2xf32>
      %140 = arith.addf %134, %136 : vector<8x2xf32>
      %141 = arith.addf %137, %138 : vector<8x2xf32>
      %142 = arith.addf %139, %140 : vector<8x2xf32>
      %143 = arith.addf %141, %142 : vector<8x2xf32>
      %144 = arith.addf %143, %5 : vector<8x2xf32>
      %145 = math.tanh %144 : vector<8x2xf32>
      %146 = arith.mulf %16, %145 : vector<8x2xf32>
      %c1_i32_51 = arith.constant 1 : i32
      %147 = tpu.dynamic_rotate %145 by %c1_i32_51 dim 0 : vector<8x2xf32>, i32 -> vector<8x2xf32>
      %148 = arith.mulf %22, %147 : vector<8x2xf32>
      %c2_i32_52 = arith.constant 2 : i32
      %149 = tpu.dynamic_rotate %145 by %c2_i32_52 dim 0 : vector<8x2xf32>, i32 -> vector<8x2xf32>
      %150 = arith.mulf %28, %149 : vector<8x2xf32>
      %c3_i32_53 = arith.constant 3 : i32
      %151 = tpu.dynamic_rotate %145 by %c3_i32_53 dim 0 : vector<8x2xf32>, i32 -> vector<8x2xf32>
      %152 = arith.mulf %34, %151 : vector<8x2xf32>
      %c4_i32_54 = arith.constant 4 : i32
      %153 = tpu.dynamic_rotate %145 by %c4_i32_54 dim 0 : vector<8x2xf32>, i32 -> vector<8x2xf32>
      %154 = arith.mulf %40, %153 : vector<8x2xf32>
      %c5_i32_55 = arith.constant 5 : i32
      %155 = tpu.dynamic_rotate %145 by %c5_i32_55 dim 0 : vector<8x2xf32>, i32 -> vector<8x2xf32>
      %156 = arith.mulf %46, %155 : vector<8x2xf32>
      %c6_i32_56 = arith.constant 6 : i32
      %157 = tpu.dynamic_rotate %145 by %c6_i32_56 dim 0 : vector<8x2xf32>, i32 -> vector<8x2xf32>
      %158 = arith.mulf %52, %157 : vector<8x2xf32>
      %c7_i32_57 = arith.constant 7 : i32
      %159 = tpu.dynamic_rotate %145 by %c7_i32_57 dim 0 : vector<8x2xf32>, i32 -> vector<8x2xf32>
      %160 = arith.mulf %58, %159 : vector<8x2xf32>
      %161 = arith.addf %146, %148 : vector<8x2xf32>
      %162 = arith.addf %150, %152 : vector<8x2xf32>
      %163 = arith.addf %154, %156 : vector<8x2xf32>
      %164 = arith.addf %158, %160 : vector<8x2xf32>
      %165 = arith.addf %161, %162 : vector<8x2xf32>
      %166 = arith.addf %163, %164 : vector<8x2xf32>
      %167 = arith.addf %165, %166 : vector<8x2xf32>
      %168 = arith.addf %167, %5 : vector<8x2xf32>
      %169 = math.tanh %168 : vector<8x2xf32>
      %170 = arith.mulf %16, %169 : vector<8x2xf32>
      %c1_i32_58 = arith.constant 1 : i32
      %171 = tpu.dynamic_rotate %169 by %c1_i32_58 dim 0 : vector<8x2xf32>, i32 -> vector<8x2xf32>
      %172 = arith.mulf %22, %171 : vector<8x2xf32>
      %c2_i32_59 = arith.constant 2 : i32
      %173 = tpu.dynamic_rotate %169 by %c2_i32_59 dim 0 : vector<8x2xf32>, i32 -> vector<8x2xf32>
      %174 = arith.mulf %28, %173 : vector<8x2xf32>
      %c3_i32_60 = arith.constant 3 : i32
      %175 = tpu.dynamic_rotate %169 by %c3_i32_60 dim 0 : vector<8x2xf32>, i32 -> vector<8x2xf32>
      %176 = arith.mulf %34, %175 : vector<8x2xf32>
      %c4_i32_61 = arith.constant 4 : i32
      %177 = tpu.dynamic_rotate %169 by %c4_i32_61 dim 0 : vector<8x2xf32>, i32 -> vector<8x2xf32>
      %178 = arith.mulf %40, %177 : vector<8x2xf32>
      %c5_i32_62 = arith.constant 5 : i32
      %179 = tpu.dynamic_rotate %169 by %c5_i32_62 dim 0 : vector<8x2xf32>, i32 -> vector<8x2xf32>
      %180 = arith.mulf %46, %179 : vector<8x2xf32>
      %c6_i32_63 = arith.constant 6 : i32
      %181 = tpu.dynamic_rotate %169 by %c6_i32_63 dim 0 : vector<8x2xf32>, i32 -> vector<8x2xf32>
      %182 = arith.mulf %52, %181 : vector<8x2xf32>
      %c7_i32_64 = arith.constant 7 : i32
      %183 = tpu.dynamic_rotate %169 by %c7_i32_64 dim 0 : vector<8x2xf32>, i32 -> vector<8x2xf32>
      %184 = arith.mulf %58, %183 : vector<8x2xf32>
      %185 = arith.addf %170, %172 : vector<8x2xf32>
      %186 = arith.addf %174, %176 : vector<8x2xf32>
      %187 = arith.addf %178, %180 : vector<8x2xf32>
      %188 = arith.addf %182, %184 : vector<8x2xf32>
      %189 = arith.addf %185, %186 : vector<8x2xf32>
      %190 = arith.addf %187, %188 : vector<8x2xf32>
      %191 = arith.addf %189, %190 : vector<8x2xf32>
      %192 = arith.addf %191, %5 : vector<8x2xf32>
      %193 = math.tanh %192 : vector<8x2xf32>
      %194 = arith.subf %193, %169 : vector<8x2xf32>
      %195 = arith.mulf %194, %194 : vector<8x2xf32>
      %196 = vector.shape_cast %195 : vector<8x2xf32> to vector<1x8x2xf32>
      %cst_65 = arith.constant dense<0.000000e+00> : vector<1xf32>
      %197 = vector.multi_reduction <add>, %196, %cst_65 [1, 2] : vector<1x8x2xf32> to vector<1xf32>
      %198 = vector.shape_cast %197 : vector<1xf32> to vector<1x1x1xf32>
      %199 = vector.extract %198[0, 0, 0] : f32 from vector<1x1x1xf32>
      %c1_i32_66 = arith.constant 1 : i32
      %200 = arith.addi %arg9, %c1_i32_66 : i32
      scf.yield %200, %193, %199 : i32, vector<8x2xf32>, f32
    }
    %c0_17 = arith.constant 0 : index
    %c0_18 = arith.constant 0 : index
    %61 = vector.load %arg4[%c0_17, %c0_18] : memref<32x8xf32, #tpu.memory_space<vmem>>, vector<32x8xf32>
    %cst_19 = arith.constant dense<0.000000e+00> : vector<32x2xf32>
    %62 = tpu.matmul %61, %60#1, %cst_19 {dimension_numbers = #tpu.dot_dimension_numbers<[1], [0], [0], [1], [0, 0, 1, 1], [], []>} : vector<32x8xf32>, vector<8x2xf32>, vector<32x2xf32> -> vector<32x2xf32>
    %c0_20 = arith.constant 0 : index
    %c0_21 = arith.constant 0 : index
    %63 = vector.load %arg5[%c0_20, %c0_21] : memref<32x2xf32, #tpu.memory_space<vmem>>, vector<32x2xf32>
    %64 = arith.addf %62, %63 : vector<32x2xf32>
    %65 = math.tanh %64 : vector<32x2xf32>
    %c0_22 = arith.constant 0 : index
    %c0_23 = arith.constant 0 : index
    %66 = vector.load %arg6[%c0_22, %c0_23] : memref<4x32xf32, #tpu.memory_space<vmem>>, vector<4x32xf32>
    %cst_24 = arith.constant dense<0.000000e+00> : vector<4x2xf32>
    %67 = tpu.matmul %66, %65, %cst_24 {dimension_numbers = #tpu.dot_dimension_numbers<[1], [0], [0], [1], [0, 0, 1, 1], [], []>} : vector<4x32xf32>, vector<32x2xf32>, vector<4x2xf32> -> vector<4x2xf32>
    %c0_25 = arith.constant 0 : index
    %c0_26 = arith.constant 0 : index
    %68 = vector.load %arg7[%c0_25, %c0_26] : memref<4x2xf32, #tpu.memory_space<vmem>>, vector<4x2xf32>
    %69 = arith.addf %67, %68 : vector<4x2xf32>
    %70 = math.tanh %69 : vector<4x2xf32>
    %cst_27 = arith.constant 4.000000e+00 : f32
    %71 = vector.broadcast %cst_27 : f32 to vector<4x2xf32>
    %72 = arith.mulf %70, %71 : vector<4x2xf32>
    %c0_28 = arith.constant 0 : index
    %c0_29 = arith.constant 0 : index
    %73 = vector.load %arg8[%c0_28, %c0_29] : memref<4x2xf32, #tpu.memory_space<vmem>>, vector<4x2xf32>
    tpu.vector_store %arg8[%c0_28, %c0_29], %72 {strides = array<i32>} : memref<4x2xf32, #tpu.memory_space<vmem>>, vector<4x2xf32>,
    return
  }
}

</mosaic_0001>

<llo_original>
// kernel: actor_forward.1
$region0: #{actor_forward.1}
  #allocation0 [shape = 'u32[]', space=smem, size = 0x4, offset = 0x4, fixed_abs, tag = 'smem constant byte address 0x4 - core index']
  #allocation1 [shape = 'u32[144,128]{1,0:T(1,128)}', space=vmem, size = 0x12000, scoped, tag = 'internal scratch']
  %s0 = inlined_call_operand.vmem [shape: f32[8,2], index: 0, kind: input, shape index: {}]
  %s1 = inlined_call_operand.vmem [shape: f32[8,8], index: 1, kind: input, shape index: {}]
  %s2 = inlined_call_operand.vmem [shape: f32[8,2], index: 2, kind: input, shape index: {}]
  %s3 = inlined_call_operand.vmem [shape: f32[8,8], index: 3, kind: input, shape index: {}]
  %s4 = inlined_call_operand.vmem [shape: f32[32,8], index: 4, kind: input, shape index: {}]
  %s5 = inlined_call_operand.vmem [shape: f32[32,2], index: 5, kind: input, shape index: {}]
  %s6 = inlined_call_operand.vmem [shape: f32[4,32], index: 6, kind: input, shape index: {}]
  %s7 = inlined_call_operand.vmem [shape: f32[4,2], index: 7, kind: input, shape index: {}]
  %s8 = inlined_call_operand.vmem [shape: f32[4,2], index: 8, kind: output, shape index: {}]
  %s9 = sld [smem:[#allocation0]]
  $region49: #{actor_forward.1} parent=0
    _
  %s11 = ssub.s32 1, %s9
  %s12 = scalar_select 0, %s11, %s9
  // Predicated region
  $region2: #{actor_forward.1} parent=0 // pred_check
    _
  $region3: #{actor_forward.1} parent=0 // pred_check_branch
    %14 = sbr.rel (0) target = $region5
  $region4: #{actor_forward.1} parent=0 // pred_region
    _
  $region5: #{actor_forward.1} parent=0 // pred_fallthru
    _
  // Predicated region
  $region6: #{actor_forward.1} parent=0 // pred_check
    _
  $region7: #{actor_forward.1} parent=0 // pred_check_branch
    %16 = sbr.rel (0) target = $region9
  $region8: #{actor_forward.1} parent=0 // pred_region
    _
  $region9: #{actor_forward.1} parent=0 // pred_fallthru
    _
  // Predicated region
  $region10: #{actor_forward.1} parent=0 // pred_check
    _
  $region11: #{actor_forward.1} parent=0 // pred_check_branch
    %18 = sbr.rel (0) target = $region13
  $region12: #{actor_forward.1} parent=0 // pred_region
    _
  $region13: #{actor_forward.1} parent=0 // pred_fallthru
    _
  // Predicated region
  $region14: #{actor_forward.1} parent=0 // pred_check
    _
  $region15: #{actor_forward.1} parent=0 // pred_check_branch
    %20 = sbr.rel (0) target = $region17
  $region16: #{actor_forward.1} parent=0 // pred_region
    _
  $region17: #{actor_forward.1} parent=0 // pred_fallthru
    _
  // Predicated region
  $region18: #{actor_forward.1} parent=0 // pred_check
    _
  $region19: #{actor_forward.1} parent=0 // pred_check_branch
    %22 = sbr.rel (0) target = $region21
  $region20: #{actor_forward.1} parent=0 // pred_region
    _
  $region21: #{actor_forward.1} parent=0 // pred_fallthru
    _
  // Predicated region
  $region22: #{actor_forward.1} parent=0 // pred_check
    _
  $region23: #{actor_forward.1} parent=0 // pred_check_branch
    %24 = sbr.rel (0) target = $region25
  $region24: #{actor_forward.1} parent=0 // pred_region
    _
  $region25: #{actor_forward.1} parent=0 // pred_fallthru
    _
  // Predicated region
  $region26: #{actor_forward.1} parent=0 // pred_check
    _
  $region27: #{actor_forward.1} parent=0 // pred_check_branch
    %26 = sbr.rel (0) target = $region29
  $region28: #{actor_forward.1} parent=0 // pred_region
    _
  $region29: #{actor_forward.1} parent=0 // pred_fallthru
    _
  // Predicated region
  $region30: #{actor_forward.1} parent=0 // pred_check
    _
  $region31: #{actor_forward.1} parent=0 // pred_check_branch
    %28 = sbr.rel (0) target = $region33
  $region32: #{actor_forward.1} parent=0 // pred_region
    _
  $region33: #{actor_forward.1} parent=0 // pred_fallthru
    _
  %v29 = vld [vmem:[%s1] sm:$0xff]
  %v30 = vld [vmem:[%s0] sm:$0xff]
  %v31 = vld [vmem:[%s2] sm:$0xff]
  %vm32 = vcmask 64512
  %v34 = vsel %vm32, %v29, 0
  %36 = vmatprep.subr.mxu0 0.0
  %37 = vmatpush1.msra.mxu0 0.0
  %38 = vmatprep.subr.mxu0 0.0
  %39 = vmatpush1.msra.mxu0 0.0
  %40 = vmatprep.subr.mxu0 0.0
  %41 = vmatpush1.msra.mxu0 0.0
  %42 = vmatprep.subr.mxu0 0.0
  %43 = vmatpush1.msra.mxu0 0.0
  %44 = vmatprep.subr.mxu0 0.0
  %45 = vmatpush1.msra.mxu0 0.0
  %46 = vmatprep.subr.mxu0 0.0
  %47 = vmatpush1.msra.mxu0 0.0
  %48 = vmatprep.subr.mxu0 0.0
  %49 = vmatpush1.msra.mxu0 0.0
  %50 = vmatprep.subr.mxu0 0.0
  %51 = vmatpush1.msra.mxu0 0.0
  %52 = vmatprep.subr.mxu0 0.0
  %53 = vmatpush1.msra.mxu0 0.0
  %54 = vmatprep.subr.mxu0 0.0
  %55 = vmatpush1.msra.mxu0 0.0
  %56 = vmatprep.subr.mxu0 0.0
  %57 = vmatpush1.msra.mxu0 0.0
  %58 = vmatprep.subr.mxu0 0.0
  %59 = vmatpush1.msra.mxu0 0.0
  %60 = vmatprep.subr.mxu0 0.0
  %61 = vmatpush1.msra.mxu0 0.0
  %62 = vmatprep.subr.mxu0 0.0
  %63 = vmatpush1.msra.mxu0 0.0
  %64 = vmatprep.subr.mxu0 0.0
  %65 = vmatpush1.msra.mxu0 0.0
  %66 = vmatprep.subr.mxu0 0.0
  %67 = vmatpush1.msra.mxu0 %v30
  %68 = vmatprep.subr.mxu0 0.0
  %69 = vmatpush2.msra.mxu0 0.0
  %70 = vmatprep.subr.mxu0 0.0
  %71 = vmatpush2.msra.mxu0 0.0
  %72 = vmatprep.subr.mxu0 0.0
  %73 = vmatpush2.msra.mxu0 0.0
  %74 = vmatprep.subr.mxu0 0.0
  %75 = vmatpush2.msra.mxu0 0.0
  %76 = vmatprep.subr.mxu0 0.0
  %77 = vmatpush2.msra.mxu0 0.0
  %78 = vmatprep.subr.mxu0 0.0
  %79 = vmatpush2.msra.mxu0 0.0
  %80 = vmatprep.subr.mxu0 0.0
  %81 = vmatpush2.msra.mxu0 0.0
  %82 = vmatprep.subr.mxu0 0.0
  %83 = vmatpush2.msra.mxu0 0.0
  %84 = vmatprep.subr.mxu0 0.0
  %85 = vmatpush2.msra.mxu0 0.0
  %86 = vmatprep.subr.mxu0 0.0
  %87 = vmatpush2.msra.mxu0 0.0
  %88 = vmatprep.subr.mxu0 0.0
  %89 = vmatpush2.msra.mxu0 0.0
  %90 = vmatprep.subr.mxu0 0.0
  %91 = vmatpush2.msra.mxu0 0.0
  %92 = vmatprep.subr.mxu0 0.0
  %93 = vmatpush2.msra.mxu0 0.0
  %94 = vmatprep.subr.mxu0 0.0
  %95 = vmatpush2.msra.mxu0 0.0
  %96 = vmatprep.subr.mxu0 0.0
  %97 = vmatpush2.msra.mxu0 0.0
  %98 = vmatprep.subr.mxu0 0.0
  %99 = vmatpush2.msra.mxu0 0.0
  %100 = vmatprep.mubr.f32.mxu0 0.0
  %101 = vmatmul.mubr.f32.gmra.mxu0 %v34
  %v102 = vpop.f32.mrf.mxu0
  %v103 = vadd.f32 %v31, %v102
  %v104 = vpop.f32.mrf.mxu0
  %105 = vdwg.mxu0
  %v106 = vtanh.pop %v103
  %v107 = vld [vmem:[%s3] sm:$0xff]
  %v108 = vlaneseq
  %v109 = vshrl.u32 %v108, 7
  %v110 = vlaneseq
  %v111 = vand.u32 %v110, 127
  %vm112 = vcmp.eq.s32.totalorder %v109, %v111
  %v113 = vsel %vm112, 1, 0
  %v114 = vcvt.s32.f32 %v113
  %v115 = vmul.f32 %v107, %v114
  %v116 = vsel %vm32, %v115, 0.0
  %117 = vadd.xlane.f32.xlu0 %v116
  %v118 = vpop.xlane.xlu0 %117
  %v119 = vrot.slane %v107, 7
  %v120 = vmul.f32 %v119, %v114
  %v121 = vsel %vm32, %v120, 0.0
  %122 = vadd.xlane.f32.xlu0 %v121
  %v123 = vpop.xlane.xlu0 %122
  %v124 = vrot.slane %v107, 6
  %v125 = vmul.f32 %v124, %v114
  %v126 = vsel %vm32, %v125, 0.0
  %127 = vadd.xlane.f32.xlu0 %v126
  %v128 = vpop.xlane.xlu0 %127
  %v129 = vrot.slane %v107, 5
  %v130 = vmul.f32 %v129, %v114
  %v131 = vsel %vm32, %v130, 0.0
  %132 = vadd.xlane.f32.xlu0 %v131
  %v133 = vpop.xlane.xlu0 %132
  %v134 = vrot.slane %v107, 4
  %v135 = vmul.f32 %v134, %v114
  %v136 = vsel %vm32, %v135, 0.0
  %137 = vadd.xlane.f32.xlu0 %v136
  %v138 = vpop.xlane.xlu0 %137
  %v139 = vrot.slane %v107, 3
  %v140 = vmul.f32 %v139, %v114
  %v141 = vsel %vm32, %v140, 0.0
  %142 = vadd.xlane.f32.xlu0 %v141
  %v143 = vpop.xlane.xlu0 %142
  %v144 = vrot.slane %v107, 2
  %v145 = vmul.f32 %v144, %v114
  %v146 = vsel %vm32, %v145, 0.0
  %147 = vadd.xlane.f32.xlu0 %v146
  %v148 = vpop.xlane.xlu0 %147
  %v149 = vrot.slane %v107, 1
  %v150 = vmul.f32 %v149, %v114
  %v151 = vsel %vm32, %v150, 0.0
  %152 = vadd.xlane.f32.xlu0 %v151
  %v153 = vpop.xlane.xlu0 %152
  // While loop
  $region34: #{actor_forward.1} parent=0 // loop_pre_header
    _
  $region35: #{actor_forward.1} parent=0 // loop_header
    %s155 = sphi 0, %s297
    %v156 = vphi 0.0, %v283
    %s157 = sphi inf, %s296
    %p158 = scmp.lt.s32.totalorder %s155, 10
    %p159 = scmp.ge.f32.partialorder %s157, 1e-08
    %p160 = pnand %p158, %p159
    %p161 = pneg %p160
  $region36: #{actor_forward.1} parent=0 // loop_header_branch
    %163 = sbr.rel (%p160) target = $region40
  $region37: #{actor_forward.1} parent=0 // loop_body
    %v164 = vmul.f32 %v118, %v156
    %v165 = vrot.slane %v156, 7
    %v166 = vmul.f32 %v123, %v165
    %v167 = vrot.slane %v156, 6
    %v168 = vmul.f32 %v128, %v167
    %v169 = vrot.slane %v156, 5
    %v170 = vmul.f32 %v133, %v169
    %v171 = vrot.slane %v156, 4
    %v172 = vmul.f32 %v138, %v171
    %v173 = vrot.slane %v156, 3
    %v174 = vmul.f32 %v143, %v173
    %v175 = vrot.slane %v156, 2
    %v176 = vmul.f32 %v148, %v175
    %v177 = vrot.slane %v156, 1
    %v178 = vmul.f32 %v153, %v177
    %v179 = vadd.f32 %v164, %v166
    %v180 = vadd.f32 %v168, %v170
    %v181 = vadd.f32 %v172, %v174
    %v182 = vadd.f32 %v176, %v178
    %v183 = vadd.f32 %v179, %v180
    %v184 = vadd.f32 %v181, %v182
    %v185 = vadd.f32 %v183, %v184
    %v186 = vadd.f32 %v185, %v106
    %v187 = vtanh.pop %v186
    %v188 = vmul.f32 %v118, %v187
    %v189 = vrot.slane %v187, 7
    %v190 = vmul.f32 %v123, %v189
    %v191 = vrot.slane %v187, 6
    %v192 = vmul.f32 %v128, %v191
    %v193 = vrot.slane %v187, 5
    %v194 = vmul.f32 %v133, %v193
    %v195 = vrot.slane %v187, 4
    %v196 = vmul.f32 %v138, %v195
    %v197 = vrot.slane %v187, 3
    %v198 = vmul.f32 %v143, %v197
    %v199 = vrot.slane %v187, 2
    %v200 = vmul.f32 %v148, %v199
    %v201 = vrot.slane %v187, 1
    %v202 = vmul.f32 %v153, %v201
    %v203 = vadd.f32 %v188, %v190
    %v204 = vadd.f32 %v192, %v194
    %v205 = vadd.f32 %v196, %v198
    %v206 = vadd.f32 %v200, %v202
    %v207 = vadd.f32 %v203, %v204
    %v208 = vadd.f32 %v205, %v206
    %v209 = vadd.f32 %v207, %v208
    %v210 = vadd.f32 %v209, %v106
    %v211 = vtanh.pop %v210
    %v212 = vmul.f32 %v118, %v211
    %v213 = vrot.slane %v211, 7
    %v214 = vmul.f32 %v123, %v213
    %v215 = vrot.slane %v211, 6
    %v216 = vmul.f32 %v128, %v215
    %v217 = vrot.slane %v211, 5
    %v218 = vmul.f32 %v133, %v217
    %v219 = vrot.slane %v211, 4
    %v220 = vmul.f32 %v138, %v219
    %v221 = vrot.slane %v211, 3
    %v222 = vmul.f32 %v143, %v221
    %v223 = vrot.slane %v211, 2
    %v224 = vmul.f32 %v148, %v223
    %v225 = vrot.slane %v211, 1
    %v226 = vmul.f32 %v153, %v225
    %v227 = vadd.f32 %v212, %v214
    %v228 = vadd.f32 %v216, %v218
    %v229 = vadd.f32 %v220, %v222
    %v230 = vadd.f32 %v224, %v226
    %v231 = vadd.f32 %v227, %v228
    %v232 = vadd.f32 %v229, %v230
    %v233 = vadd.f32 %v231, %v232
    %v234 = vadd.f32 %v233, %v106
    %v235 = vtanh.pop %v234
    %v236 = vmul.f32 %v118, %v235
    %v237 = vrot.slane %v235, 7
    %v238 = vmul.f32 %v123, %v237
    %v239 = vrot.slane %v235, 6
    %v240 = vmul.f32 %v128, %v239
    %v241 = vrot.slane %v235, 5
    %v242 = vmul.f32 %v133, %v241
    %v243 = vrot.slane %v235, 4
    %v244 = vmul.f32 %v138, %v243
    %v245 = vrot.slane %v235, 3
    %v246 = vmul.f32 %v143, %v245
    %v247 = vrot.slane %v235, 2
    %v248 = vmul.f32 %v148, %v247
    %v249 = vrot.slane %v235, 1
    %v250 = vmul.f32 %v153, %v249
    %v251 = vadd.f32 %v236, %v238
    %v252 = vadd.f32 %v240, %v242
    %v253 = vadd.f32 %v244, %v246
    %v254 = vadd.f32 %v248, %v250
    %v255 = vadd.f32 %v251, %v252
    %v256 = vadd.f32 %v253, %v254
    %v257 = vadd.f32 %v255, %v256
    %v258 = vadd.f32 %v257, %v106
    %v259 = vtanh.pop %v258
    %v260 = vmul.f32 %v118, %v259
    %v261 = vrot.slane %v259, 7
    %v262 = vmul.f32 %v123, %v261
    %v263 = vrot.slane %v259, 6
    %v264 = vmul.f32 %v128, %v263
    %v265 = vrot.slane %v259, 5
    %v266 = vmul.f32 %v133, %v265
    %v267 = vrot.slane %v259, 4
    %v268 = vmul.f32 %v138, %v267
    %v269 = vrot.slane %v259, 3
    %v270 = vmul.f32 %v143, %v269
    %v271 = vrot.slane %v259, 2
    %v272 = vmul.f32 %v148, %v271
    %v273 = vrot.slane %v259, 1
    %v274 = vmul.f32 %v153, %v273
    %v275 = vadd.f32 %v260, %v262
    %v276 = vadd.f32 %v264, %v266
    %v277 = vadd.f32 %v268, %v270
    %v278 = vadd.f32 %v272, %v274
    %v279 = vadd.f32 %v275, %v276
    %v280 = vadd.f32 %v277, %v278
    %v281 = vadd.f32 %v279, %v280
    %v282 = vadd.f32 %v281, %v106
    %v283 = vtanh.pop %v282
    %v284 = vsub.f32 %v283, %v259
    %v285 = vmul.f32 %v284, %v284
    %vm286 = vcmask 15360
    %v287 = vsel %vm286, %v285, 0.0
    %288 = vadd.xlane.f32.xlu0 %v287
    %v289 = vpop.xlane.xlu0 %288
    %v290 = vrot.slane %v289, 4
    %v291 = vadd.f32 %v289, %v290
    %v292 = vrot.slane %v291, 2
    %v293 = vadd.f32 %v291, %v292
    %v294 = vrot.slane %v293, 1
    %v295 = vadd.f32 %v293, %v294
    %s296 = vtos %v295
    %s297 = sadd.s32 %s155, 1
  $region38: #{actor_forward.1} parent=0 // loop_footer
    _
  $region39: #{actor_forward.1} parent=0 // loop_footer_branch
    %154 = sbr.rel target = $region35
  $region40: #{actor_forward.1} parent=0 // loop_exit
    _
  %v298 = vld [vmem:[%s4] sm:$0xff]
  %v299 = vld [vmem:[%s4 + $0x8] sm:$0xff]
  %v300 = vld [vmem:[%s4 + $0x10] sm:$0xff]
  %v301 = vld [vmem:[%s4 + $0x18] sm:$0xff]
  %v302 = vld [vmem:[%s5] sm:$0xff]
  %v303 = vld [vmem:[%s5 + $0x8] sm:$0xff]
  %v304 = vld [vmem:[%s5 + $0x10] sm:$0xff]
  %v305 = vld [vmem:[%s5 + $0x18] sm:$0xff]
  %v307 = vsel %vm32, %v298, 0
  %v310 = vsel %vm32, %v299, 0
  %v313 = vsel %vm32, %v300, 0
  %v316 = vsel %vm32, %v301, 0
  %318 = vmatprep.subr.mxu0 0.0
  %319 = vmatpush1.msra.mxu0 0.0
  %320 = vmatprep.subr.mxu0 0.0
  %321 = vmatpush1.msra.mxu0 0.0
  %322 = vmatprep.subr.mxu0 0.0
  %323 = vmatpush1.msra.mxu0 0.0
  %324 = vmatprep.subr.mxu0 0.0
  %325 = vmatpush1.msra.mxu0 0.0
  %326 = vmatprep.subr.mxu0 0.0
  %327 = vmatpush1.msra.mxu0 0.0
  %328 = vmatprep.subr.mxu0 0.0
  %329 = vmatpush1.msra.mxu0 0.0
  %330 = vmatprep.subr.mxu0 0.0
  %331 = vmatpush1.msra.mxu0 0.0
  %332 = vmatprep.subr.mxu0 0.0
  %333 = vmatpush1.msra.mxu0 0.0
  %334 = vmatprep.subr.mxu0 0.0
  %335 = vmatpush1.msra.mxu0 0.0
  %336 = vmatprep.subr.mxu0 0.0
  %337 = vmatpush1.msra.mxu0 0.0
  %338 = vmatprep.subr.mxu0 0.0
  %339 = vmatpush1.msra.mxu0 0.0
  %340 = vmatprep.subr.mxu0 0.0
  %341 = vmatpush1.msra.mxu0 0.0
  %342 = vmatprep.subr.mxu0 0.0
  %343 = vmatpush1.msra.mxu0 0.0
  %344 = vmatprep.subr.mxu0 0.0
  %345 = vmatpush1.msra.mxu0 0.0
  %346 = vmatprep.subr.mxu0 0.0
  %347 = vmatpush1.msra.mxu0 0.0
  %348 = vmatprep.subr.mxu0 0.0
  %349 = vmatpush1.msra.mxu0 %v156
  %350 = vmatprep.subr.mxu0 0.0
  %351 = vmatpush2.msra.mxu0 0.0
  %352 = vmatprep.subr.mxu0 0.0
  %353 = vmatpush2.msra.mxu0 0.0
  %354 = vmatprep.subr.mxu0 0.0
  %355 = vmatpush2.msra.mxu0 0.0
  %356 = vmatprep.subr.mxu0 0.0
  %357 = vmatpush2.msra.mxu0 0.0
  %358 = vmatprep.subr.mxu0 0.0
  %359 = vmatpush2.msra.mxu0 0.0
  %360 = vmatprep.subr.mxu0 0.0
  %361 = vmatpush2.msra.mxu0 0.0
  %362 = vmatprep.subr.mxu0 0.0
  %363 = vmatpush2.msra.mxu0 0.0
  %364 = vmatprep.subr.mxu0 0.0
  %365 = vmatpush2.msra.mxu0 0.0
  %366 = vmatprep.subr.mxu0 0.0
  %367 = vmatpush2.msra.mxu0 0.0
  %368 = vmatprep.subr.mxu0 0.0
  %369 = vmatpush2.msra.mxu0 0.0
  %370 = vmatprep.subr.mxu0 0.0
  %371 = vmatpush2.msra.mxu0 0.0
  %372 = vmatprep.subr.mxu0 0.0
  %373 = vmatpush2.msra.mxu0 0.0
  %374 = vmatprep.subr.mxu0 0.0
  %375 = vmatpush2.msra.mxu0 0.0
  %376 = vmatprep.subr.mxu0 0.0
  %377 = vmatpush2.msra.mxu0 0.0
  %378 = vmatprep.subr.mxu0 0.0
  %379 = vmatpush2.msra.mxu0 0.0
  %380 = vmatprep.subr.mxu0 0.0
  %381 = vmatpush2.msra.mxu0 0.0
  %382 = vmatprep.mubr.f32.mxu0 0.0
  %383 = vmatmul.mubr.f32.gmra.mxu0 %v307
  %v384 = vpop.f32.mrf.mxu0
  %v385 = vadd.f32 %v302, %v384
  %v386 = vpop.f32.mrf.mxu0
  %387 = vmatprep.mubr.f32.mxu0 0.0
  %388 = vmatmul.mubr.f32.gmra.mxu0 %v310
  %v389 = vpop.f32.mrf.mxu0
  %v390 = vadd.f32 %v303, %v389
  %v391 = vpop.f32.mrf.mxu0
  %392 = vmatprep.mubr.f32.mxu0 0.0
  %393 = vmatmul.mubr.f32.gmra.mxu0 %v313
  %v394 = vpop.f32.mrf.mxu0
  %v395 = vadd.f32 %v304, %v394
  %v396 = vpop.f32.mrf.mxu0
  %397 = vmatprep.mubr.f32.mxu0 0.0
  %398 = vmatmul.mubr.f32.gmra.mxu0 %v316
  %v399 = vpop.f32.mrf.mxu0
  %v400 = vadd.f32 %v305, %v399
  %v401 = vpop.f32.mrf.mxu0
  %402 = vdwg.mxu0
  %v403 = vtanh.pop %v385
  %v404 = vtanh.pop %v390
  %v405 = vtanh.pop %v395
  %v406 = vtanh.pop %v400
  %v407 = vld [vmem:[%s6] sm:$0xf]
  %v408 = vld [vmem:[%s7] sm:$0xf]
  %vm409 = vcmask 261120
  %v411 = vsel %vm409, %v407, 0
  %413 = vmatprep.subr.mxu0 0.0
  %414 = vmatpush1.msra.mxu0 0.0
  %415 = vmatprep.subr.mxu0 0.0
  %416 = vmatpush1.msra.mxu0 0.0
  %417 = vmatprep.subr.mxu0 0.0
  %418 = vmatpush1.msra.mxu0 0.0
  %419 = vmatprep.subr.mxu0 0.0
  %420 = vmatpush1.msra.mxu0 0.0
  %421 = vmatprep.subr.mxu0 0.0
  %422 = vmatpush1.msra.mxu0 0.0
  %423 = vmatprep.subr.mxu0 0.0
  %424 = vmatpush1.msra.mxu0 0.0
  %425 = vmatprep.subr.mxu0 0.0
  %426 = vmatpush1.msra.mxu0 0.0
  %427 = vmatprep.subr.mxu0 0.0
  %428 = vmatpush1.msra.mxu0 0.0
  %429 = vmatprep.subr.mxu0 0.0
  %430 = vmatpush1.msra.mxu0 0.0
  %431 = vmatprep.subr.mxu0 0.0
  %432 = vmatpush1.msra.mxu0 0.0
  %433 = vmatprep.subr.mxu0 0.0
  %434 = vmatpush1.msra.mxu0 0.0
  %435 = vmatprep.subr.mxu0 0.0
  %436 = vmatpush1.msra.mxu0 0.0
  %437 = vmatprep.subr.mxu0 0.0
  %438 = vmatpush1.msra.mxu0 %v406
  %439 = vmatprep.subr.mxu0 0.0
  %440 = vmatpush1.msra.mxu0 %v405
  %441 = vmatprep.subr.mxu0 0.0
  %442 = vmatpush1.msra.mxu0 %v404
  %443 = vmatprep.subr.mxu0 0.0
  %444 = vmatpush1.msra.mxu0 %v403
  %445 = vmatprep.subr.mxu0 0.0
  %446 = vmatpush2.msra.mxu0 0.0
  %447 = vmatprep.subr.mxu0 0.0
  %448 = vmatpush2.msra.mxu0 0.0
  %449 = vmatprep.subr.mxu0 0.0
  %450 = vmatpush2.msra.mxu0 0.0
  %451 = vmatprep.subr.mxu0 0.0
  %452 = vmatpush2.msra.mxu0 0.0
  %453 = vmatprep.subr.mxu0 0.0
  %454 = vmatpush2.msra.mxu0 0.0
  %455 = vmatprep.subr.mxu0 0.0
  %456 = vmatpush2.msra.mxu0 0.0
  %457 = vmatprep.subr.mxu0 0.0
  %458 = vmatpush2.msra.mxu0 0.0
  %459 = vmatprep.subr.mxu0 0.0
  %460 = vmatpush2.msra.mxu0 0.0
  %461 = vmatprep.subr.mxu0 0.0
  %462 = vmatpush2.msra.mxu0 0.0
  %463 = vmatprep.subr.mxu0 0.0
  %464 = vmatpush2.msra.mxu0 0.0
  %465 = vmatprep.subr.mxu0 0.0
  %466 = vmatpush2.msra.mxu0 0.0
  %467 = vmatprep.subr.mxu0 0.0
  %468 = vmatpush2.msra.mxu0 0.0
  %469 = vmatprep.subr.mxu0 0.0
  %470 = vmatpush2.msra.mxu0 0.0
  %471 = vmatprep.subr.mxu0 0.0
  %472 = vmatpush2.msra.mxu0 0.0
  %473 = vmatprep.subr.mxu0 0.0
  %474 = vmatpush2.msra.mxu0 0.0
  %475 = vmatprep.subr.mxu0 0.0
  %476 = vmatpush2.msra.mxu0 0.0
  %477 = vmatprep.mubr.f32.mxu0 0.0
  %478 = vmatmul.mubr.f32.gmra.mxu0 %v411
  %v479 = vpop.f32.mrf.mxu0
  %v480 = vadd.f32 %v408, %v479
  %v481 = vpop.f32.mrf.mxu0
  %482 = vdwg.mxu0
  %v483 = vtanh.pop %v480
  %v484 = vmul.f32 %v483, 4.0
  %vm485 = vcmask 11264
  %486 = vst.msk [vmem:[%s8] sm:$0xf] %vm485, %v484
  // Predicated region
  $region41: #{actor_forward.1} parent=0 // pred_check
    _
  $region42: #{actor_forward.1} parent=0 // pred_check_branch
    %488 = sbr.rel (0) target = $region44
  $region43: #{actor_forward.1} parent=0 // pred_region
    _
  $region44: #{actor_forward.1} parent=0 // pred_fallthru
    _
  // Predicated region
  $region45: #{actor_forward.1} parent=0 // pred_check
    _
  $region46: #{actor_forward.1} parent=0 // pred_check_branch
    %490 = sbr.rel (0) target = $region48
  $region47: #{actor_forward.1} parent=0 // pred_region
    _
  $region48: #{actor_forward.1} parent=0 // pred_fallthru
    _

</llo_original>
